<compile_context>
chip_gen: v6e
topology: v6e:2x2x1
jax: 0.10.0
libtpu: 0.0.40
codegen_flags: <defaults>
</compile_context>

<pallas_src>
import functools

import jax
import jax.numpy as jnp
import numpy as np
from jax.experimental import pallas as pl
from jax.experimental.pallas import tpu as pltpu


def _make_divisible(ch, divisor=8, min_ch=None):
    if min_ch is None:
        min_ch = divisor
    new_ch = max(min_ch, int(ch + divisor / 2) // divisor * divisor)
    if new_ch < 0.9 * ch:
        new_ch += divisor
    return new_ch


# ---------------------------------------------------------------------------
# Trace-time chip profile.
#   v7x : 64 MiB VMEM per TensorCore, 2 TensorCores -> smaller blocks, keep
#         the batch split so both cores get balanced work.
#   v5e / v6e : 128 MiB VMEM, single TensorCore -> bigger blocks, higher
#         scoped-VMEM limit, no forced batch split.
# ---------------------------------------------------------------------------
@functools.lru_cache(maxsize=1)
def _chip_profile():
    vmem = None
    try:
        vmem = int(pltpu.get_tpu_info().vmem_capacity_bytes)
    except Exception:
        vmem = None
    kind = ""
    try:
        kind = jax.devices()[0].device_kind.lower()
    except Exception:
        pass
    if vmem is not None:
        small_vmem = vmem <= (64 << 20)
    else:
        small_vmem = "7" in kind  # v7x family; conservative default otherwise
    return {
        "is_v7x_like": bool(small_vmem),
        "vmem_limit": (32 << 20) if small_vmem else (64 << 20),
        "target_block": (4 << 20) if small_vmem else (8 << 20),
        "max_block": (6 << 20) if small_vmem else (12 << 20),
    }


def _choose_tb(n, per_sample_bytes, prof):
    """Batch-tile so each x block is ~target_block bytes (never above
    max_block when avoidable); on v7x-like chips additionally prefer an even
    number (>=4 when possible) of balanced grid steps for the 2 TensorCores."""
    per_sample_bytes = max(int(per_sample_bytes), 1)
    tb = max(1, min(n, prof["target_block"] // per_sample_bytes))
    tb = min(tb, max(1, prof["max_block"] // per_sample_bytes))
    if prof["is_v7x_like"] and n >= 2:
        min_steps = 4 if n >= 4 else 2
        steps = -(-n // tb)
        steps = max(steps, min_steps)
        if steps % 2 and steps < n:
            steps += 1
        steps = min(steps, n)
        tb = -(-n // steps)
    return max(tb, 1)


def _se_kernel(x_ref, w1t_ref, b1_ref, w2t_ref, b2_ref, o_ref, *,
               channels_on_lanes):
    # Block layout: (TB, HW, C) if channels_on_lanes else (TB, C, HW).
    # Weights: w1t (C, Sq), w2t (Sq, C); biases: b1 (1, Sq), b2 (1, C).
    x = x_ref[...]

    # adaptive_avg_pool2d(x, (1,1)): per-(sample, channel) mean, accumulated
    # in f32 inside the reduction (no full f32 materialization of the block).
    red_axis = 1 if channels_on_lanes else 2
    pooled = jnp.mean(x, axis=red_axis, dtype=jnp.float32)          # (TB, C)

    # fc1 (1x1 conv) + ReLU.
    s = jnp.dot(pooled, w1t_ref[...],
                preferred_element_type=jnp.float32) + b1_ref[...]   # (TB, Sq)
    s = jnp.maximum(s, 0.0)

    # fc2 (1x1 conv) + hardsigmoid: relu6(x + 3) / 6.
    s = jnp.dot(s, w2t_ref[...],
                preferred_element_type=jnp.float32) + b2_ref[...]   # (TB, C)
    s = jnp.clip((s + 3.0) * (1.0 / 6.0), 0.0, 1.0)

    # Rescale in x's native dtype (scale is in [0, 1]); broadcast over space.
    s = s.astype(x.dtype)
    if channels_on_lanes:
        o_ref[...] = (x * s[:, None, :]).astype(o_ref.dtype)
    else:
        o_ref[...] = (x * s[:, :, None]).astype(o_ref.dtype)


@jax.jit
def squeeze_excitation(x, w1, b1, w2, b2):
    """x: (N, C, H, W); w1: (Sq, C); b1: (Sq, 1); w2: (C, Sq); b2: (C, 1)."""
    N, C, H, W = x.shape
    Sq = w1.shape[0]
    HW = H * W
    itemsize = jnp.dtype(x.dtype).itemsize
    prof = _chip_profile()

    # Lane-axis choice: whichever of {HW, C} fills 128-lane vregs better goes
    # last. Tie / HW-better -> no transpose (keep (N, C, HW)).
    def lane_eff(d):
        return d / (-(-d // 128) * 128)

    channels_on_lanes = lane_eff(C) > lane_eff(HW)

    # HBM-side layout plumbing: flatten spatial, optionally put C on lanes,
    # pre-transpose weights, make biases row vectors.
    xr = x.reshape(N, C, HW)
    if channels_on_lanes:
        xr = xr.transpose(0, 2, 1)        # (N, HW, C)
        blk_tail = (HW, C)
    else:
        blk_tail = (C, HW)
    w1t = w1.T                            # (C, Sq)
    w2t = w2.T                            # (Sq, C)
    b1r = b1.reshape(1, Sq)
    b2r = b2.reshape(1, C)

    per_sample_bytes = C * HW * itemsize
    tb = _choose_tb(N, per_sample_bytes, prof)
    grid = (pl.cdiv(N, tb),)              # ragged last block OK: rows independent

    w_item = jnp.dtype(w1.dtype).itemsize
    weight_bytes = (w1t.size + w2t.size + b1r.size + b2r.size) * w_item
    cost = pl.CostEstimate(
        flops=int(4 * N * C * Sq + 2 * N * C * HW),
        transcendentals=0,
        bytes_accessed=int(2 * N * C * HW * itemsize + weight_bytes),
    )

    kernel = functools.partial(_se_kernel, channels_on_lanes=channels_on_lanes)

    out = pl.pallas_call(
        kernel,
        out_shape=jax.ShapeDtypeStruct((N,) + blk_tail, x.dtype),
        grid_spec=pltpu.PrefetchScalarGridSpec(
            num_scalar_prefetch=0,
            grid=grid,
            in_specs=[
                pl.BlockSpec((tb,) + blk_tail, lambda n: (n, 0, 0)),
                pl.BlockSpec((C, Sq), lambda n: (0, 0)),
                pl.BlockSpec((1, Sq), lambda n: (0, 0)),
                pl.BlockSpec((Sq, C), lambda n: (0, 0)),
                pl.BlockSpec((1, C), lambda n: (0, 0)),
            ],
            out_specs=pl.BlockSpec((tb,) + blk_tail, lambda n: (n, 0, 0)),
        ),
        compiler_params=pltpu.CompilerParams(
            dimension_semantics=("parallel",),
            vmem_limit_bytes=prof["vmem_limit"],
        ),
        cost_estimate=cost,
    )(xr, w1t, b1r, w2t, b2r)

    if channels_on_lanes:
        out = out.transpose(0, 2, 1)      # back to (N, C, HW)
    return out.reshape(N, C, H, W)


def _reference(x, w1, b1, w2, b2):
    # Pure-JAX reference mirroring the PyTorch forward.
    pooled = jnp.mean(x, axis=(2, 3))                                  # (N, C)
    s = pooled @ w1.T + b1[:, 0]                                       # (N, Sq)
    s = jnp.maximum(s, 0.0)
    s = s @ w2.T + b2[:, 0]                                            # (N, C)
    s = jnp.clip((s + 3.0) / 6.0, 0.0, 1.0)
    return x * s[:, :, None, None]


if __name__ == "__main__":
    # Small shapes consistent with the module: N=2, C=16, H=W=8.
    N, C, H, W = 2, 16, 8, 8
    squeeze_factor = 4
    Sq = _make_divisible(C // squeeze_factor)                          # -> 8

    key = jax.random.PRNGKey(0)
    kx, k1, kb1, k2, kb2 = jax.random.split(key, 5)

    x = jax.random.normal(kx, (N, C, H, W), dtype=jnp.float32)
    # Conv2d(kernel_size=1) weights are (out, in, 1, 1); stored as (out, in).
    w1 = jax.random.normal(k1, (Sq, C), dtype=jnp.float32) * 0.1
    b1 = jax.random.normal(kb1, (Sq, 1), dtype=jnp.float32) * 0.1
    w2 = jax.random.normal(k2, (C, Sq), dtype=jnp.float32) * 0.1
    b2 = jax.random.normal(kb2, (C, 1), dtype=jnp.float32) * 0.1

    out = squeeze_excitation(x, w1, b1, w2, b2)
    out = jax.block_until_ready(out)

    ref = _reference(x, w1, b1, w2, b2)
    np.testing.assert_allclose(np.asarray(out), np.asarray(ref),
                               rtol=1e-5, atol=1e-5)

    print("KERNEL_OK")
</pallas_src>

<mosaic_0001>
module attributes {stable_mosaic.version = 11 : i64} {
  func.func @_se_kernel(%arg0: i32, %arg1: memref<2x16x64xf32, #tpu.memory_space<vmem>>, %arg2: memref<16x8xf32, #tpu.memory_space<vmem>>, %arg3: memref<1x8xf32, #tpu.memory_space<vmem>>, %arg4: memref<8x16xf32, #tpu.memory_space<vmem>>, %arg5: memref<1x16xf32, #tpu.memory_space<vmem>>, %arg6: memref<2x16x64xf32, #tpu.memory_space<vmem>>) attributes {dimension_semantics = [#tpu.dimension_semantics<parallel>], iteration_bounds = array<i64: 1>, scalar_prefetch = 0 : i64, scratch_operands = 0 : i64, tpu.core_type = #tpu.core_type<tc>, window_params = [{transform_indices = @transform_0, window_bounds = array<i64: 2, 16, 64>}, {pipeline_mode = #tpu.pipeline_mode<synchronous>, transform_indices = @transform_1, window_bounds = array<i64: 16, 8>}, {pipeline_mode = #tpu.pipeline_mode<synchronous>, transform_indices = @transform_2, window_bounds = array<i64: 1, 8>}, {pipeline_mode = #tpu.pipeline_mode<synchronous>, transform_indices = @transform_3, window_bounds = array<i64: 8, 16>}, {pipeline_mode = #tpu.pipeline_mode<synchronous>, transform_indices = @transform_4, window_bounds = array<i64: 1, 16>}, {transform_indices = @transform_5, window_bounds = array<i64: 2, 16, 64>}]} {
    %c0 = arith.constant 0 : index
    %c0_0 = arith.constant 0 : index
    %c0_1 = arith.constant 0 : index
    %0 = vector.load %arg1[%c0, %c0_0, %c0_1] : memref<2x16x64xf32, #tpu.memory_space<vmem>>, vector<2x16x64xf32>
    %cst = arith.constant dense<0.000000e+00> : vector<2x16xf32>
    %1 = vector.multi_reduction <add>, %0, %cst [2] : vector<2x16x64xf32> to vector<2x16xf32>
    %cst_2 = arith.constant 6.400000e+01 : f32
    %2 = vector.broadcast %cst_2 : f32 to vector<2x16xf32>
    %3 = arith.divf %1, %2 : vector<2x16xf32>
    %c0_3 = arith.constant 0 : index
    %c0_4 = arith.constant 0 : index
    %4 = vector.load %arg2[%c0_3, %c0_4] : memref<16x8xf32, #tpu.memory_space<vmem>>, vector<16x8xf32>
    %cst_5 = arith.constant dense<0.000000e+00> : vector<2x8xf32>
    %5 = tpu.matmul %3, %4, %cst_5 {dimension_numbers = #tpu.dot_dimension_numbers<[1], [0], [0], [1], [0, 0, 1, 1], [], []>} : vector<2x16xf32>, vector<16x8xf32>, vector<2x8xf32> -> vector<2x8xf32>
    %c0_6 = arith.constant 0 : index
    %c0_7 = arith.constant 0 : index
    %6 = vector.load %arg3[%c0_6, %c0_7] : memref<1x8xf32, #tpu.memory_space<vmem>>, vector<1x8xf32>
    %7 = vector.broadcast %6 : vector<1x8xf32> to vector<2x8xf32>
    %8 = arith.addf %5, %7 : vector<2x8xf32>
    %cst_8 = arith.constant 0.000000e+00 : f32
    %9 = vector.broadcast %cst_8 : f32 to vector<2x8xf32>
    %10 = arith.maximumf %8, %9 : vector<2x8xf32>
    %c0_9 = arith.constant 0 : index
    %c0_10 = arith.constant 0 : index
    %11 = vector.load %arg4[%c0_9, %c0_10] : memref<8x16xf32, #tpu.memory_space<vmem>>, vector<8x16xf32>
    %cst_11 = arith.constant dense<0.000000e+00> : vector<2x16xf32>
    %12 = tpu.matmul %10, %11, %cst_11 {dimension_numbers = #tpu.dot_dimension_numbers<[1], [0], [0], [1], [0, 0, 1, 1], [], []>} : vector<2x8xf32>, vector<8x16xf32>, vector<2x16xf32> -> vector<2x16xf32>
    %c0_12 = arith.constant 0 : index
    %c0_13 = arith.constant 0 : index
    %13 = vector.load %arg5[%c0_12, %c0_13] : memref<1x16xf32, #tpu.memory_space<vmem>>, vector<1x16xf32>
    %14 = vector.broadcast %13 : vector<1x16xf32> to vector<2x16xf32>
    %15 = arith.addf %12, %14 : vector<2x16xf32>
    %cst_14 = arith.constant 3.000000e+00 : f32
    %16 = vector.broadcast %cst_14 : f32 to vector<2x16xf32>
    %17 = arith.addf %15, %16 : vector<2x16xf32>
    %cst_15 = arith.constant 0.166666672 : f32
    %18 = vector.broadcast %cst_15 : f32 to vector<2x16xf32>
    %19 = arith.mulf %17, %18 : vector<2x16xf32>
    %cst_16 = arith.constant 0.000000e+00 : f32
    %cst_17 = arith.constant 1.000000e+00 : f32
    %20 = vector.broadcast %cst_16 : f32 to vector<2x16xf32>
    %21 = arith.maximumf %20, %19 : vector<2x16xf32>
    %22 = vector.broadcast %cst_17 : f32 to vector<2x16xf32>
    %23 = arith.minimumf %22, %21 : vector<2x16xf32>
    %24 = vector.shape_cast %23 : vector<2x16xf32> to vector<2x16x1xf32>
    %25 = vector.broadcast %24 : vector<2x16x1xf32> to vector<2x16x64xf32>
    %26 = arith.mulf %0, %25 : vector<2x16x64xf32>
    %c0_18 = arith.constant 0 : index
    %c0_19 = arith.constant 0 : index
    %c0_20 = arith.constant 0 : index
    %27 = vector.load %arg6[%c0_18, %c0_19, %c0_20] : memref<2x16x64xf32, #tpu.memory_space<vmem>>, vector<2x16x64xf32>
    tpu.vector_store %arg6[%c0_18, %c0_19, %c0_20], %26 {strides = array<i32>} : memref<2x16x64xf32, #tpu.memory_space<vmem>>, vector<2x16x64xf32>,
    return
  }
  func.func @transform_0(%arg0: i32) -> (i32, i32, i32) {
    %c0_i32 = arith.constant 0 : i32
    %c0_i32_0 = arith.constant 0 : i32
    %c0_i32_1 = arith.constant 0 : i32
    return %arg0, %c0_i32, %c0_i32_0 : i32, i32, i32
  }
  func.func @transform_1(%arg0: i32) -> (i32, i32) {
    %c0_i32 = arith.constant 0 : i32
    %c0_i32_0 = arith.constant 0 : i32
    %c0_i32_1 = arith.constant 0 : i32
    return %c0_i32, %c0_i32_0 : i32, i32
  }
  func.func @transform_2(%arg0: i32) -> (i32, i32) {
    %c0_i32 = arith.constant 0 : i32
    %c0_i32_0 = arith.constant 0 : i32
    %c0_i32_1 = arith.constant 0 : i32
    return %c0_i32, %c0_i32_0 : i32, i32
  }
  func.func @transform_3(%arg0: i32) -> (i32, i32) {
    %c0_i32 = arith.constant 0 : i32
    %c0_i32_0 = arith.constant 0 : i32
    %c0_i32_1 = arith.constant 0 : i32
    return %c0_i32, %c0_i32_0 : i32, i32
  }
  func.func @transform_4(%arg0: i32) -> (i32, i32) {
    %c0_i32 = arith.constant 0 : i32
    %c0_i32_0 = arith.constant 0 : i32
    %c0_i32_1 = arith.constant 0 : i32
    return %c0_i32, %c0_i32_0 : i32, i32
  }
  func.func @transform_5(%arg0: i32) -> (i32, i32, i32) {
    %c0_i32 = arith.constant 0 : i32
    %c0_i32_0 = arith.constant 0 : i32
    %c0_i32_1 = arith.constant 0 : i32
    return %arg0, %c0_i32, %c0_i32_0 : i32, i32, i32
  }
}

</mosaic_0001>

<llo_original>
// kernel: squeeze_excitation.1
$region0: #{squeeze_excitation.1}
  #allocation0 [shape = 'u32[]', space=smem, size = 0x4, offset = 0x4, fixed_abs, tag = 'smem constant byte address 0x4 - core index']
  #allocation1 [shape = 'u32[144,128]{1,0:T(1,128)}', space=vmem, size = 0x12000, scoped, tag = 'internal scratch']
  %s0 = inlined_call_operand.vmem [shape: f32[2,16,64], index: 0, kind: input, shape index: {}]
  %s1 = inlined_call_operand.vmem [shape: f32[16,8], index: 1, kind: input, shape index: {}]
  %s2 = inlined_call_operand.vmem [shape: f32[1,8], index: 2, kind: input, shape index: {}]
  %s3 = inlined_call_operand.vmem [shape: f32[8,16], index: 3, kind: input, shape index: {}]
  %s4 = inlined_call_operand.vmem [shape: f32[1,16], index: 4, kind: input, shape index: {}]
  %s5 = inlined_call_operand.vmem [shape: f32[2,16,64], index: 5, kind: output, shape index: {}]
  %s6 = sld [smem:[#allocation0]]
  $region30: #{squeeze_excitation.1} parent=0
    _
  %s8 = ssub.s32 1, %s6
  %s9 = scalar_select 0, %s8, %s6
  // Predicated region
  $region2: #{squeeze_excitation.1} parent=0 // pred_check
    _
  $region3: #{squeeze_excitation.1} parent=0 // pred_check_branch
    %11 = sbr.rel (0) target = $region5
  $region4: #{squeeze_excitation.1} parent=0 // pred_region
    _
  $region5: #{squeeze_excitation.1} parent=0 // pred_fallthru
    _
  // Predicated region
  $region6: #{squeeze_excitation.1} parent=0 // pred_check
    _
  $region7: #{squeeze_excitation.1} parent=0 // pred_check_branch
    %13 = sbr.rel (0) target = $region9
  $region8: #{squeeze_excitation.1} parent=0 // pred_region
    _
  $region9: #{squeeze_excitation.1} parent=0 // pred_fallthru
    _
  // Predicated region
  $region10: #{squeeze_excitation.1} parent=0 // pred_check
    _
  $region11: #{squeeze_excitation.1} parent=0 // pred_check_branch
    %15 = sbr.rel (0) target = $region13
  $region12: #{squeeze_excitation.1} parent=0 // pred_region
    _
  $region13: #{squeeze_excitation.1} parent=0 // pred_fallthru
    _
  // Predicated region
  $region14: #{squeeze_excitation.1} parent=0 // pred_check
    _
  $region15: #{squeeze_excitation.1} parent=0 // pred_check_branch
    %17 = sbr.rel (0) target = $region17
  $region16: #{squeeze_excitation.1} parent=0 // pred_region
    _
  $region17: #{squeeze_excitation.1} parent=0 // pred_fallthru
    _
  // Predicated region
  $region18: #{squeeze_excitation.1} parent=0 // pred_check
    _
  $region19: #{squeeze_excitation.1} parent=0 // pred_check_branch
    %19 = sbr.rel (0) target = $region21
  $region20: #{squeeze_excitation.1} parent=0 // pred_region
    _
  $region21: #{squeeze_excitation.1} parent=0 // pred_fallthru
    _
  %v20 = vld [vmem:[%s0] sm:$0xff]
  %v21 = vld [vmem:[%s0 + $0x8] sm:$0xff]
  %v22 = vld [vmem:[%s0 + $0x10] sm:$0xff]
  %v23 = vld [vmem:[%s0 + $0x18] sm:$0xff]
  %vm24 = vcmask 523264
  %v25 = vsel %vm24, %v20, 0.0
  %26 = vadd.xlane.f32.xlu0 %v25
  %v27 = vpop.xlane.xlu0 %26
  %v28 = vsel %vm24, %v21, 0.0
  %29 = vadd.xlane.f32.xlu0 %v28
  %v30 = vpop.xlane.xlu0 %29
  %v31 = vsel %vm24, %v22, 0.0
  %32 = vadd.xlane.f32.xlu0 %v31
  %v33 = vpop.xlane.xlu0 %32
  %v34 = vsel %vm24, %v23, 0.0
  %35 = vadd.xlane.f32.xlu0 %v34
  %v36 = vpop.xlane.xlu0 %35
  %v37 = vrcp.pop 64.0
  %v38 = vmul.f32 %v27, %v37
  %v39 = vmul.f32 %v30, %v37
  %v40 = vmul.f32 %v33, %v37
  %v41 = vmul.f32 %v36, %v37
  %v42 = vld [vmem:[%s1] sm:$0xff]
  %v43 = vld [vmem:[%s1 + $0x8] sm:$0xff]
  %v44 = vld [vmem:[%s2] sm:$0x1]
  %v46 = vlaneseq
  %v47 = vshrl.u32 %v46, 7
  %v48 = vsub.s32 0, %v47
  %v49 = vrot.slane %v44, %v48
  %v55 = vlaneseq
  %v56 = vand.u32 %v55, 127
  %v57 = vlaneseq
  %v58 = vshrl.u32 %v57, 7
  %v59 = vsub.s32 %v56, %v58
  %v60 = vrot.slane %v38, %v59
  %v61 = vadd.s32 %v56, 4294967288
  %v62 = vlaneseq
  %v63 = vshrl.u32 %v62, 7
  %v64 = vsub.s32 %v61, %v63
  %v65 = vrot.slane %v39, %v64
  %vm66 = vcmask 130112
  %v67 = vsel %vm66, %v65, %v60
  %v68 = vlaneseq
  %v69 = vshrl.u32 %v68, 7
  %v70 = vsub.s32 %v56, %v69
  %v71 = vrot.slane %v40, %v70
  %v72 = vlaneseq
  %v73 = vshrl.u32 %v72, 7
  %v74 = vsub.s32 %v61, %v73
  %v75 = vrot.slane %v41, %v74
  %v76 = vsel %vm66, %v75, %v71
  %vm77 = vcmask 1041409
  %v78 = vsel %vm77, %v76, %v67
  %vm79 = vcmask 130048
  %v80 = vsel %vm79, %v78, 0
  %82 = vmatprep.subr.mxu0 0.0
  %83 = vmatpush1.msra.mxu0 0.0
  %84 = vmatprep.subr.mxu0 0.0
  %85 = vmatpush1.msra.mxu0 0.0
  %86 = vmatprep.subr.mxu0 0.0
  %87 = vmatpush1.msra.mxu0 0.0
  %88 = vmatprep.subr.mxu0 0.0
  %89 = vmatpush1.msra.mxu0 0.0
  %90 = vmatprep.subr.mxu0 0.0
  %91 = vmatpush1.msra.mxu0 0.0
  %92 = vmatprep.subr.mxu0 0.0
  %93 = vmatpush1.msra.mxu0 0.0
  %94 = vmatprep.subr.mxu0 0.0
  %95 = vmatpush1.msra.mxu0 0.0
  %96 = vmatprep.subr.mxu0 0.0
  %97 = vmatpush1.msra.mxu0 0.0
  %98 = vmatprep.subr.mxu0 0.0
  %99 = vmatpush1.msra.mxu0 0.0
  %100 = vmatprep.subr.mxu0 0.0
  %101 = vmatpush1.msra.mxu0 0.0
  %102 = vmatprep.subr.mxu0 0.0
  %103 = vmatpush1.msra.mxu0 0.0
  %104 = vmatprep.subr.mxu0 0.0
  %105 = vmatpush1.msra.mxu0 0.0
  %106 = vmatprep.subr.mxu0 0.0
  %107 = vmatpush1.msra.mxu0 0.0
  %108 = vmatprep.subr.mxu0 0.0
  %109 = vmatpush1.msra.mxu0 0.0
  %110 = vmatprep.subr.mxu0 0.0
  %111 = vmatpush1.msra.mxu0 %v43
  %112 = vmatprep.subr.mxu0 0.0
  %113 = vmatpush1.msra.mxu0 %v42
  %114 = vmatprep.subr.mxu0 0.0
  %115 = vmatpush2.msra.mxu0 0.0
  %116 = vmatprep.subr.mxu0 0.0
  %117 = vmatpush2.msra.mxu0 0.0
  %118 = vmatprep.subr.mxu0 0.0
  %119 = vmatpush2.msra.mxu0 0.0
  %120 = vmatprep.subr.mxu0 0.0
  %121 = vmatpush2.msra.mxu0 0.0
  %122 = vmatprep.subr.mxu0 0.0
  %123 = vmatpush2.msra.mxu0 0.0
  %124 = vmatprep.subr.mxu0 0.0
  %125 = vmatpush2.msra.mxu0 0.0
  %126 = vmatprep.subr.mxu0 0.0
  %127 = vmatpush2.msra.mxu0 0.0
  %128 = vmatprep.subr.mxu0 0.0
  %129 = vmatpush2.msra.mxu0 0.0
  %130 = vmatprep.subr.mxu0 0.0
  %131 = vmatpush2.msra.mxu0 0.0
  %132 = vmatprep.subr.mxu0 0.0
  %133 = vmatpush2.msra.mxu0 0.0
  %134 = vmatprep.subr.mxu0 0.0
  %135 = vmatpush2.msra.mxu0 0.0
  %136 = vmatprep.subr.mxu0 0.0
  %137 = vmatpush2.msra.mxu0 0.0
  %138 = vmatprep.subr.mxu0 0.0
  %139 = vmatpush2.msra.mxu0 0.0
  %140 = vmatprep.subr.mxu0 0.0
  %141 = vmatpush2.msra.mxu0 0.0
  %142 = vmatprep.subr.mxu0 0.0
  %143 = vmatpush2.msra.mxu0 0.0
  %144 = vmatprep.subr.mxu0 0.0
  %145 = vmatpush2.msra.mxu0 0.0
  %146 = vmatprep.mubr.f32.mxu0 0.0
  %147 = vmatmul.mubr.f32.gmra.mxu0 %v80
  %v148 = vpop.f32.mrf.mxu0
  %v149 = vadd.f32 %v49, %v148
  %v150 = vpop.f32.mrf.mxu0
  %151 = vdwg.mxu0
  %v152 = vmax.f32 %v149, 0.0
  %v153 = vld [vmem:[%s3] sm:$0xff]
  %v154 = vld [vmem:[%s4] sm:$0x1]
  %v156 = vlaneseq
  %v157 = vshrl.u32 %v156, 7
  %v158 = vsub.s32 0, %v157
  %v159 = vrot.slane %v154, %v158
  %vm161 = vcmask 64512
  %v163 = vsel %vm161, %v152, 0
  %165 = vmatprep.subr.mxu0 0.0
  %166 = vmatpush1.msra.mxu0 0.0
  %167 = vmatprep.subr.mxu0 0.0
  %168 = vmatpush1.msra.mxu0 0.0
  %169 = vmatprep.subr.mxu0 0.0
  %170 = vmatpush1.msra.mxu0 0.0
  %171 = vmatprep.subr.mxu0 0.0
  %172 = vmatpush1.msra.mxu0 0.0
  %173 = vmatprep.subr.mxu0 0.0
  %174 = vmatpush1.msra.mxu0 0.0
  %175 = vmatprep.subr.mxu0 0.0
  %176 = vmatpush1.msra.mxu0 0.0
  %177 = vmatprep.subr.mxu0 0.0
  %178 = vmatpush1.msra.mxu0 0.0
  %179 = vmatprep.subr.mxu0 0.0
  %180 = vmatpush1.msra.mxu0 0.0
  %181 = vmatprep.subr.mxu0 0.0
  %182 = vmatpush1.msra.mxu0 0.0
  %183 = vmatprep.subr.mxu0 0.0
  %184 = vmatpush1.msra.mxu0 0.0
  %185 = vmatprep.subr.mxu0 0.0
  %186 = vmatpush1.msra.mxu0 0.0
  %187 = vmatprep.subr.mxu0 0.0
  %188 = vmatpush1.msra.mxu0 0.0
  %189 = vmatprep.subr.mxu0 0.0
  %190 = vmatpush1.msra.mxu0 0.0
  %191 = vmatprep.subr.mxu0 0.0
  %192 = vmatpush1.msra.mxu0 0.0
  %193 = vmatprep.subr.mxu0 0.0
  %194 = vmatpush1.msra.mxu0 0.0
  %195 = vmatprep.subr.mxu0 0.0
  %196 = vmatpush1.msra.mxu0 %v153
  %197 = vmatprep.subr.mxu0 0.0
  %198 = vmatpush2.msra.mxu0 0.0
  %199 = vmatprep.subr.mxu0 0.0
  %200 = vmatpush2.msra.mxu0 0.0
  %201 = vmatprep.subr.mxu0 0.0
  %202 = vmatpush2.msra.mxu0 0.0
  %203 = vmatprep.subr.mxu0 0.0
  %204 = vmatpush2.msra.mxu0 0.0
  %205 = vmatprep.subr.mxu0 0.0
  %206 = vmatpush2.msra.mxu0 0.0
  %207 = vmatprep.subr.mxu0 0.0
  %208 = vmatpush2.msra.mxu0 0.0
  %209 = vmatprep.subr.mxu0 0.0
  %210 = vmatpush2.msra.mxu0 0.0
  %211 = vmatprep.subr.mxu0 0.0
  %212 = vmatpush2.msra.mxu0 0.0
  %213 = vmatprep.subr.mxu0 0.0
  %214 = vmatpush2.msra.mxu0 0.0
  %215 = vmatprep.subr.mxu0 0.0
  %216 = vmatpush2.msra.mxu0 0.0
  %217 = vmatprep.subr.mxu0 0.0
  %218 = vmatpush2.msra.mxu0 0.0
  %219 = vmatprep.subr.mxu0 0.0
  %220 = vmatpush2.msra.mxu0 0.0
  %221 = vmatprep.subr.mxu0 0.0
  %222 = vmatpush2.msra.mxu0 0.0
  %223 = vmatprep.subr.mxu0 0.0
  %224 = vmatpush2.msra.mxu0 0.0
  %225 = vmatprep.subr.mxu0 0.0
  %226 = vmatpush2.msra.mxu0 0.0
  %227 = vmatprep.subr.mxu0 0.0
  %228 = vmatpush2.msra.mxu0 0.0
  %229 = vmatprep.mubr.f32.mxu0 0.0
  %230 = vmatmul.mubr.f32.gmra.mxu0 %v163
  %v231 = vpop.f32.mrf.mxu0
  %v232 = vadd.f32 %v159, %v231
  %v233 = vpop.f32.mrf.mxu0
  %234 = vdwg.mxu0
  %v235 = vadd.f32 %v232, 3.0
  %v236 = vmul.f32 %v235, 0.16666667
  %v237 = vmax.f32 %v236, 0.0
  %v238 = vmin.f32 %v237, 1.0
  %v239 = vlaneseq
  %v240 = vshrl.u32 %v239, 7
  %v241 = vsub.s32 0, %v240
  %v242 = vrot.slane %v238, %v241
  %244 = vbcast.lane.b32.xlu0 %v242, 256
  %v245 = vpop.permute.xlu0 %244
  %s247 = sor.u32 256, 8
  %248 = vbcast.lane.b32.xlu0 %v242, %s247
  %v249 = vpop.permute.xlu0 %248
  %v250 = vlaneseq
  %v251 = vshrl.u32 %v250, 7
  %v252 = vsub.s32 1, %v251
  %v253 = vrot.slane %v238, %v252
  %255 = vbcast.lane.b32.xlu0 %v253, 256
  %v256 = vpop.permute.xlu0 %255
  %s258 = sor.u32 256, 8
  %259 = vbcast.lane.b32.xlu0 %v253, %s258
  %v260 = vpop.permute.xlu0 %259
  %v261 = vmul.f32 %v20, %v245
  %v262 = vmul.f32 %v21, %v249
  %v263 = vmul.f32 %v22, %v256
  %v264 = vmul.f32 %v23, %v260
  %265 = vst.msk [vmem:[%s5] sm:$0xff] %vm24, %v261
  %266 = vst.msk [vmem:[%s5 + $0x8] sm:$0xff] %vm24, %v262
  %267 = vst.msk [vmem:[%s5 + $0x10] sm:$0xff] %vm24, %v263
  %268 = vst.msk [vmem:[%s5 + $0x18] sm:$0xff] %vm24, %v264
  // Predicated region
  $region22: #{squeeze_excitation.1} parent=0 // pred_check
    _
  $region23: #{squeeze_excitation.1} parent=0 // pred_check_branch
    %270 = sbr.rel (0) target = $region25
  $region24: #{squeeze_excitation.1} parent=0 // pred_region
    _
  $region25: #{squeeze_excitation.1} parent=0 // pred_fallthru
    _
  // Predicated region
  $region26: #{squeeze_excitation.1} parent=0 // pred_check
    _
  $region27: #{squeeze_excitation.1} parent=0 // pred_check_branch
    %272 = sbr.rel (0) target = $region29
  $region28: #{squeeze_excitation.1} parent=0 // pred_region
    _
  $region29: #{squeeze_excitation.1} parent=0 // pred_fallthru
    _

</llo_original>
